<compile_context>
chip_gen: v6e
topology: v6e:2x2x1
jax: 0.10.0
libtpu: 0.0.40
codegen_flags: <defaults>
</compile_context>

<pallas_src>
import numpy as np
import jax
import jax.numpy as jnp
from jax import lax
from jax.experimental import pallas as pl
from jax.experimental.pallas import tpu as pltpu

# ---------------------------------------------------------------------------
# Fixed (non-trainable) Sobel filter bank, identical to the PyTorch module.
# ---------------------------------------------------------------------------
_SOBEL_0 = np.array([[-1.0, 0.0, 1.0], [-2.0, 0.0, 2.0], [-1.0, 0.0, 1.0]], np.float32)
_SOBEL_45 = np.array([[-2.0, -1.0, 0.0], [-1.0, 0.0, 1.0], [0.0, 1.0, 2.0]], np.float32)
_SOBEL_90 = np.array([[-1.0, -2.0, -1.0], [0.0, 0.0, 0.0], [1.0, 2.0, 1.0]], np.float32)
_SOBEL_135 = np.array([[0.0, -1.0, -2.0], [1.0, 0.0, -1.0], [2.0, 1.0, 0.0]], np.float32)
SOBEL = np.stack([_SOBEL_0, _SOBEL_45, _SOBEL_90, _SOBEL_135], axis=0)  # (4, 3, 3)


def _round_up(v, m):
    return ((v + m - 1) // m) * m


def _make_kernel(h, w):
    """Kernel for a lane-dense (TN, H*W) tile: 8-tap folded Sobel -> sigmoid -> gate."""
    hw = h * w

    def kernel(coef_ref, x_ref, out_ref):
        # coef_ref: SMEM (9,)      -- conv2-folded 3x3 coeffs, row-major, coef[4] == 0
        # x_ref   : VMEM (TN, H*W) -- flattened images (lane-dense last dim)
        # out_ref : VMEM (TN, H*W)
        x = x_ref[...]

        # Boundary masks, built once (hoisted out of the tap accumulation).
        flat = lax.broadcasted_iota(jnp.int32, x.shape, 1)            # per-image pixel id
        col = lax.rem(flat, jnp.full(x.shape, w, dtype=jnp.int32))    # column index j

        # Column neighbours via lane rolls, computed once and reused by all rows.
        # pltpu.roll follows jnp.roll semantics: roll(a, s)[p] == a[(p - s) % hw].
        x_l = jnp.where(col == 0, 0.0, pltpu.roll(x, shift=1, axis=1))        # x[i, j-1]
        x_r = jnp.where(col == w - 1, 0.0, pltpu.roll(x, shift=hw - 1, axis=1))  # x[i, j+1]

        # Per-row stencil contributions (centre tap coef[4] is exactly 0 -> skipped).
        c = coef_ref
        row_top = c[0] * x_l + c[1] * x + c[2] * x_r     # to be read from input row i-1
        row_mid = c[3] * x_l + c[5] * x_r                # input row i
        row_bot = c[6] * x_l + c[7] * x + c[8] * x_r     # to be read from input row i+1

        # Row shifts: +-W lane rolls applied to the combined row contribution,
        # masked at the first/last image row (this also kills the circular wrap).
        top = jnp.where(flat < w, 0.0,
                        pltpu.roll(row_top, shift=w, axis=1))
        bot = jnp.where(flat >= (h - 1) * w, 0.0,
                        pltpu.roll(row_bot, shift=hw - w, axis=1))

        edge = row_mid + top + bot                       # no zero-init accumulator
        out_ref[...] = (jax.nn.sigmoid(edge) * x).astype(out_ref.dtype)

    return kernel


def _vmem_block_budget():
    """Per-step data-block budget derived from the chip's VMEM capacity."""
    try:
        cap = int(pltpu.get_tpu_info().vmem_capacity_bytes)
    except Exception:
        cap = 64 << 20                      # conservative fallback (v7x physical VMEM)
    # quarter of capacity, clamped to [8 MiB, 48 MiB] (leaves headroom on every gen)
    return int(min(max(cap // 4, 8 << 20), 48 << 20))


def _choose_block_n(n, h, w, budget_bytes):
    """Images per grid step; accounts for (8,128) tile padding and double buffering."""
    hw_pad = _round_up(h * w, 128)
    per_img = 2 * 2 * hw_pad * 4            # (in + out) blocks, double-buffered, f32
    tn = int(budget_bytes // per_img)
    if tn >= n:
        return n                            # full N extent in one block
    if tn >= 16 and n >= 16:
        # keep >=2 grid steps so v7x can shard the axis across both TensorCores
        tn = min(tn, _round_up(pl.cdiv(n, 2), 8))
    # partial blocks: second-minor block dim must be a multiple of 8
    tn = max(8, (tn // 8) * 8)
    # TODO(synk): very large single images (per_img > budget) should be H-tiled
    # with a 1-row halo instead; not needed at these shapes.
    return int(min(tn, n))


def edge_attention1_forward(x, w2):
    """x: (b, c, h, w); w2: conv2 weight with 4 elements (e.g. (4,) or (1,4,1,1))."""
    b, c, h, w = x.shape
    n, hw = b * c, h * w

    # Lane-dense view: one row per single-channel image (free reshape in HBM).
    x2 = x.reshape(n, hw).astype(jnp.float32)

    # Fold conv2 (1x1, 4->1) into the fixed Sobel bank: C = sum_k w2[k] * Sobel_k.
    w2f = jnp.asarray(w2, jnp.float32).reshape(-1)
    coef = jnp.einsum("k,kij->ij", w2f, jnp.asarray(SOBEL)).reshape(9)

    budget = _vmem_block_budget()
    tn = _choose_block_n(n, h, w, budget)
    grid = (pl.cdiv(n, tn),)

    block_bytes = _round_up(tn, 8) * _round_up(hw, 128) * 4
    vmem_limit = int(min(max(2 * 2 * block_bytes + (4 << 20), 16 << 20), 48 << 20))

    out = pl.pallas_call(
        _make_kernel(h, w),
        out_shape=jax.ShapeDtypeStruct((n, hw), jnp.float32),
        grid=grid,
        in_specs=[
            pl.BlockSpec(memory_space=pltpu.MemorySpace.SMEM),   # folded 3x3 coeffs
            pl.BlockSpec((tn, hw), lambda i: (i, 0)),            # image tile
        ],
        out_specs=pl.BlockSpec((tn, hw), lambda i: (i, 0)),
        compiler_params=pltpu.CompilerParams(
            dimension_semantics=("parallel",),
            vmem_limit_bytes=vmem_limit),
    )(coef, x2)

    return out.reshape(b, c, h, w)


def _reference_forward(x, w2):
    """Pure-JAX reference matching the PyTorch forward."""
    b, c, h, w = x.shape
    t = x.reshape(b * c, 1, h, w)
    k1 = jnp.asarray(SOBEL).reshape(4, 1, 3, 3)
    edge = lax.conv_general_dilated(
        t, k1, window_strides=(1, 1), padding="SAME",
        dimension_numbers=("NCHW", "OIHW", "NCHW"))
    k2 = jnp.asarray(w2, jnp.float32).reshape(1, 4, 1, 1)
    edge = lax.conv_general_dilated(
        edge, k2, window_strides=(1, 1), padding="SAME",
        dimension_numbers=("NCHW", "OIHW", "NCHW"))
    edge = edge.reshape(b, c, h, w)
    return jax.nn.sigmoid(edge) * x


if __name__ == "__main__":
    key = jax.random.PRNGKey(0)
    kx, kw = jax.random.split(key)

    # Small shapes consistent with the module's forward (NCHW input).
    b, c, h, w = 2, 4, 16, 16
    x = jax.random.normal(kx, (b, c, h, w), dtype=jnp.float32)

    # conv2 weight: nn.Conv2d(4, 1, 1, bias=False) -> (1, 4, 1, 1), flattened to (4,).
    w2 = jax.random.uniform(kw, (4,), dtype=jnp.float32, minval=-0.5, maxval=0.5)

    out = jax.block_until_ready(edge_attention1_forward(x, w2))

    ref = _reference_forward(x, w2)
    np.testing.assert_allclose(np.asarray(out), np.asarray(ref), rtol=1e-4, atol=1e-4)

    print("KERNEL_OK")
</pallas_src>

<mosaic_0001>
module attributes {stable_mosaic.version = 11 : i64} {
  func.func @kernel(%arg0: i32, %arg1: memref<9xf32, #tpu.memory_space<smem>>, %arg2: memref<8x256xf32, #tpu.memory_space<vmem>>, %arg3: memref<8x256xf32, #tpu.memory_space<vmem>>) attributes {dimension_semantics = [#tpu.dimension_semantics<parallel>], iteration_bounds = array<i64: 1>, scalar_prefetch = 0 : i64, scratch_operands = 0 : i64, tpu.core_type = #tpu.core_type<tc>, window_params = [{transform_indices = @transform_0, window_bounds = array<i64: 9>}, {transform_indices = @transform_1, window_bounds = array<i64: 8, 256>}, {transform_indices = @transform_2, window_bounds = array<i64: 8, 256>}]} {
    %c0 = arith.constant 0 : index
    %c0_0 = arith.constant 0 : index
    %0 = vector.load %arg2[%c0, %c0_0] : memref<8x256xf32, #tpu.memory_space<vmem>>, vector<8x256xf32>
    %1 = tpu.iota {dimensions = array<i32: 1>} : vector<8x256xi32>
    %c16_i32 = arith.constant 16 : i32
    %2 = vector.broadcast %c16_i32 : i32 to vector<8x256xi32>
    %3 = arith.remsi %1, %2 : vector<8x256xi32>
    %c0_i32 = arith.constant 0 : i32
    %4 = vector.broadcast %c0_i32 : i32 to vector<8x256xi32>
    %5 = arith.cmpi eq, %3, %4 : vector<8x256xi32>
    %c1_i32 = arith.constant 1 : i32
    %6 = tpu.dynamic_rotate %0 by %c1_i32 dim 1 : vector<8x256xf32>, i32 -> vector<8x256xf32>
    %cst = arith.constant 0.000000e+00 : f32
    %7 = vector.broadcast %cst : f32 to vector<8x256xf32>
    %8 = arith.select %5, %7, %6 : vector<8x256xi1>, vector<8x256xf32>
    %c15_i32 = arith.constant 15 : i32
    %9 = vector.broadcast %c15_i32 : i32 to vector<8x256xi32>
    %10 = arith.cmpi eq, %3, %9 : vector<8x256xi32>
    %c255_i32 = arith.constant 255 : i32
    %11 = tpu.dynamic_rotate %0 by %c255_i32 dim 1 : vector<8x256xf32>, i32 -> vector<8x256xf32>
    %cst_1 = arith.constant 0.000000e+00 : f32
    %12 = vector.broadcast %cst_1 : f32 to vector<8x256xf32>
    %13 = arith.select %10, %12, %11 : vector<8x256xi1>, vector<8x256xf32>
    %c0_2 = arith.constant 0 : index
    %14 = memref.load %arg1[%c0_2] : memref<9xf32, #tpu.memory_space<smem>>
    %15 = vector.broadcast %14 : f32 to vector<8x256xf32>
    %16 = arith.mulf %15, %8 : vector<8x256xf32>
    %c1 = arith.constant 1 : index
    %17 = memref.load %arg1[%c1] : memref<9xf32, #tpu.memory_space<smem>>
    %18 = vector.broadcast %17 : f32 to vector<8x256xf32>
    %19 = arith.mulf %18, %0 : vector<8x256xf32>
    %20 = arith.addf %16, %19 : vector<8x256xf32>
    %c2 = arith.constant 2 : index
    %21 = memref.load %arg1[%c2] : memref<9xf32, #tpu.memory_space<smem>>
    %22 = vector.broadcast %21 : f32 to vector<8x256xf32>
    %23 = arith.mulf %22, %13 : vector<8x256xf32>
    %24 = arith.addf %20, %23 : vector<8x256xf32>
    %c3 = arith.constant 3 : index
    %25 = memref.load %arg1[%c3] : memref<9xf32, #tpu.memory_space<smem>>
    %26 = vector.broadcast %25 : f32 to vector<8x256xf32>
    %27 = arith.mulf %26, %8 : vector<8x256xf32>
    %c5 = arith.constant 5 : index
    %28 = memref.load %arg1[%c5] : memref<9xf32, #tpu.memory_space<smem>>
    %29 = vector.broadcast %28 : f32 to vector<8x256xf32>
    %30 = arith.mulf %29, %13 : vector<8x256xf32>
    %31 = arith.addf %27, %30 : vector<8x256xf32>
    %c6 = arith.constant 6 : index
    %32 = memref.load %arg1[%c6] : memref<9xf32, #tpu.memory_space<smem>>
    %33 = vector.broadcast %32 : f32 to vector<8x256xf32>
    %34 = arith.mulf %33, %8 : vector<8x256xf32>
    %c7 = arith.constant 7 : index
    %35 = memref.load %arg1[%c7] : memref<9xf32, #tpu.memory_space<smem>>
    %36 = vector.broadcast %35 : f32 to vector<8x256xf32>
    %37 = arith.mulf %36, %0 : vector<8x256xf32>
    %38 = arith.addf %34, %37 : vector<8x256xf32>
    %c8 = arith.constant 8 : index
    %39 = memref.load %arg1[%c8] : memref<9xf32, #tpu.memory_space<smem>>
    %40 = vector.broadcast %39 : f32 to vector<8x256xf32>
    %41 = arith.mulf %40, %13 : vector<8x256xf32>
    %42 = arith.addf %38, %41 : vector<8x256xf32>
    %c16_i32_3 = arith.constant 16 : i32
    %43 = vector.broadcast %c16_i32_3 : i32 to vector<8x256xi32>
    %44 = arith.cmpi slt, %1, %43 : vector<8x256xi32>
    %c16_i32_4 = arith.constant 16 : i32
    %45 = tpu.dynamic_rotate %24 by %c16_i32_4 dim 1 : vector<8x256xf32>, i32 -> vector<8x256xf32>
    %cst_5 = arith.constant 0.000000e+00 : f32
    %46 = vector.broadcast %cst_5 : f32 to vector<8x256xf32>
    %47 = arith.select %44, %46, %45 : vector<8x256xi1>, vector<8x256xf32>
    %c240_i32 = arith.constant 240 : i32
    %48 = vector.broadcast %c240_i32 : i32 to vector<8x256xi32>
    %49 = arith.cmpi sge, %1, %48 : vector<8x256xi32>
    %c240_i32_6 = arith.constant 240 : i32
    %50 = tpu.dynamic_rotate %42 by %c240_i32_6 dim 1 : vector<8x256xf32>, i32 -> vector<8x256xf32>
    %cst_7 = arith.constant 0.000000e+00 : f32
    %51 = vector.broadcast %cst_7 : f32 to vector<8x256xf32>
    %52 = arith.select %49, %51, %50 : vector<8x256xi1>, vector<8x256xf32>
    %53 = arith.addf %31, %47 : vector<8x256xf32>
    %54 = arith.addf %53, %52 : vector<8x256xf32>
    %55 = arith.negf %54 : vector<8x256xf32>
    %56 = math.exp %55 : vector<8x256xf32>
    %cst_8 = arith.constant 1.000000e+00 : f32
    %57 = vector.broadcast %cst_8 : f32 to vector<8x256xf32>
    %58 = arith.addf %57, %56 : vector<8x256xf32>
    %59 = arith.divf %57, %58 : vector<8x256xf32>
    %60 = arith.mulf %59, %0 : vector<8x256xf32>
    %c0_9 = arith.constant 0 : index
    %c0_10 = arith.constant 0 : index
    %61 = vector.load %arg3[%c0_9, %c0_10] : memref<8x256xf32, #tpu.memory_space<vmem>>, vector<8x256xf32>
    tpu.vector_store %arg3[%c0_9, %c0_10], %60 {strides = array<i32>} : memref<8x256xf32, #tpu.memory_space<vmem>>, vector<8x256xf32>,
    return
  }
  func.func @transform_0(%arg0: i32) -> i32 {
    %c0_i32 = arith.constant 0 : i32
    %c0_i32_0 = arith.constant 0 : i32
    return %c0_i32 : i32
  }
  func.func @transform_1(%arg0: i32) -> (i32, i32) {
    %c0_i32 = arith.constant 0 : i32
    %c0_i32_0 = arith.constant 0 : i32
    return %arg0, %c0_i32 : i32, i32
  }
  func.func @transform_2(%arg0: i32) -> (i32, i32) {
    %c0_i32 = arith.constant 0 : i32
    %c0_i32_0 = arith.constant 0 : i32
    return %arg0, %c0_i32 : i32, i32
  }
}

</mosaic_0001>

<llo_original>
// kernel: tpu_custom_call.1
$region0: #{tpu_custom_call.1}
  #allocation0 [shape = 'u32[]', space=smem, size = 0x4, offset = 0x4, fixed_abs, tag = 'smem constant byte address 0x4 - core index']
  #allocation1 [shape = 'u32[144,128]{1,0:T(1,128)}', space=vmem, size = 0x12000, scoped, tag = 'internal scratch']
  %s0 = inlined_call_operand.hbm [shape: f32[9], index: 0, kind: input, shape index: {}]
  %s1 = inlined_call_operand.hbm [shape: f32[8,256], index: 1, kind: input, shape index: {}]
  %s2 = inlined_call_operand.hbm [shape: f32[8,256], index: 2, kind: output, shape index: {}]
  %s3 = sld [smem:[#allocation0]]
  $region26: #{tpu_custom_call.1} parent=0
    _
  %s5 = ssub.s32 1, %s3
  %s6 = scalar_select 0, %s5, %s3
  $region1: #{tpu_custom_call.1} parent=0
    #allocation2 [shape = 'u8[512]{0}', space=smem, size = 0x200, scoped, tag = 'input window, operand 0, single buffered']
    #allocation3 [shape = 's32[1]{0}', space=sflag, size = 0x4, scoped, tag = 'scoped memory for tpu_custom_call.1']
    #allocation4 [shape = 's32[1]{0}', space=sflag, size = 0x4, scoped, tag = 'scoped memory for tpu_custom_call.1']
    #allocation5 [shape = 's32[1]{0}', space=sflag, size = 0x4, scoped, tag = 'scoped memory for tpu_custom_call.1']
    #allocation6 [shape = 'u8[8192]{0}', space=vmem, size = 0x2000, scoped, tag = 'input window, operand 1, single buffered']
    #allocation7 [shape = 'u8[8192]{0}', space=vmem, size = 0x2000, scoped, tag = 'output window, operand 0, single buffered']
    %7 = vsyncpa [#allocation5], 0
    %8 = vsyncpa [#allocation3], 0
    %9 = vsyncpa [#allocation4], 0
    // Predicated region
    $region2: #{tpu_custom_call.1} parent=1 // pred_check
      _
    $region3: #{tpu_custom_call.1} parent=1 // pred_check_branch
      %11 = sbr.rel (0) target = $region5
    $region4: #{tpu_custom_call.1} parent=1 // pred_region
      %s13 = ssub.s32 16, 16
      %14 = vsyncadd [#allocation5], %s13
      %17 = dma.hbm_to_smem %s0, 16, [#allocation2], [#allocation5]
    $region5: #{tpu_custom_call.1} parent=1 // pred_fallthru
      _
    // Predicated region
    $region6: #{tpu_custom_call.1} parent=1 // pred_check
      _
    $region7: #{tpu_custom_call.1} parent=1 // pred_check_branch
      %19 = sbr.rel (0) target = $region9
    $region8: #{tpu_custom_call.1} parent=1 // pred_region
      %s21 = ssub.s32 256, 256
      %22 = vsyncadd [#allocation3], %s21
      %s24 = sshll.u32 [#allocation6], 4
      %s25 = int_to_ptr.vmem [resolvable:$true] %s24
      %27 = dma.hbm_to_vmem [thread:$0]  %s1, 256, %s25, [#allocation3]
    $region9: #{tpu_custom_call.1} parent=1 // pred_fallthru
      _
    // Predicated region
    $region10: #{tpu_custom_call.1} parent=1 // pred_check
      _
    $region11: #{tpu_custom_call.1} parent=1 // pred_check_branch
      %29 = sbr.rel (0) target = $region13
    $region12: #{tpu_custom_call.1} parent=1 // pred_region
      %30 = dma.done [#allocation5], 16
    $region13: #{tpu_custom_call.1} parent=1 // pred_fallthru
      _
    // Predicated region
    $region14: #{tpu_custom_call.1} parent=1 // pred_check
      _
    $region15: #{tpu_custom_call.1} parent=1 // pred_check_branch
      %32 = sbr.rel (0) target = $region17
    $region16: #{tpu_custom_call.1} parent=1 // pred_region
      %33 = dma.done [#allocation3], 256
    $region17: #{tpu_custom_call.1} parent=1 // pred_fallthru
      _
    %34 = sfence
    %v35 = vld [vmem:[#allocation6] sm:$0xff]
    %v36 = vld [vmem:[#allocation6 + $0x8] sm:$0xff]
    %v37 = vlaneseq
    %v38 = vand.u32 %v37, 127
    %v39 = vadd.s32 %v38, 128
    %vm40 = vcmp.lt.s32.totalorder %v38, 0
    %v41 = vsub.s32 0, %v38
    %v42 = vsel %vm40, %v41, %v38
    %v43 = vshrl.u32 %v42, 4
    %v44 = vand.u32 %v42, 15
    %v45 = vsub.s32 0, %v44
    %v46 = vsel %vm40, %v45, %v44
    %vm47 = vcmp.lt.s32.totalorder %v39, 0
    %v48 = vsub.s32 0, %v39
    %v49 = vsel %vm47, %v48, %v39
    %v50 = vshrl.u32 %v49, 4
    %v51 = vand.u32 %v49, 15
    %v52 = vsub.s32 0, %v51
    %v53 = vsel %vm47, %v52, %v51
    %vm54 = vcmp.eq.s32.totalorder %v46, 0
    %vm55 = vcmp.eq.s32.totalorder %v53, 0
    %56 = vrot.lane.b32.xlu0 %v35, 1
    %v57 = vpop.permute.xlu0 %56
    %58 = vrot.lane.b32.xlu0 %v36, 1
    %v59 = vpop.permute.xlu0 %58
    %vm60 = vcmp.lt.s32.totalorder %v38, 1
    %v61 = vsel %vm60, %v57, %v59
    %v62 = vsel %vm60, %v59, %v57
    %v63 = vsel %vm54, 0.0, %v62
    %v64 = vsel %vm55, 0.0, %v61
    %vm65 = vcmp.eq.s32.totalorder %v46, 15
    %vm66 = vcmp.eq.s32.totalorder %v53, 15
    %67 = vrot.lane.b32.xlu0 %v35, 127
    %v68 = vpop.permute.xlu0 %67
    %69 = vrot.lane.b32.xlu0 %v36, 127
    %v70 = vpop.permute.xlu0 %69
    %vm71 = vcmp.lt.s32.totalorder %v38, 127
    %v72 = vsel %vm71, %v68, %v70
    %v73 = vsel %vm71, %v70, %v68
    %v74 = vsel %vm65, 0.0, %v72
    %v75 = vsel %vm66, 0.0, %v73
    %s76 = sld [smem:[#allocation2]]
    %v77 = vstv %s76
    %v78 = vmul.f32 %v77, %v63
    %v79 = vmul.f32 %v77, %v64
    %s80 = sld [smem:[#allocation2 + $0x1]]
    %v81 = vstv %s80
    %v82 = vmul.f32 %v81, %v35
    %v83 = vmul.f32 %v81, %v36
    %v84 = vadd.f32 %v78, %v82
    %v85 = vadd.f32 %v79, %v83
    %s86 = sld [smem:[#allocation2 + $0x2]]
    %v87 = vstv %s86
    %v88 = vmul.f32 %v87, %v74
    %v89 = vmul.f32 %v87, %v75
    %v90 = vadd.f32 %v84, %v88
    %v91 = vadd.f32 %v85, %v89
    %s92 = sld [smem:[#allocation2 + $0x3]]
    %v93 = vstv %s92
    %v94 = vmul.f32 %v93, %v63
    %v95 = vmul.f32 %v93, %v64
    %s96 = sld [smem:[#allocation2 + $0x5]]
    %v97 = vstv %s96
    %v98 = vmul.f32 %v97, %v74
    %v99 = vmul.f32 %v97, %v75
    %v100 = vadd.f32 %v94, %v98
    %v101 = vadd.f32 %v95, %v99
    %s102 = sld [smem:[#allocation2 + $0x6]]
    %v103 = vstv %s102
    %v104 = vmul.f32 %v103, %v63
    %v105 = vmul.f32 %v103, %v64
    %s106 = sld [smem:[#allocation2 + $0x7]]
    %v107 = vstv %s106
    %v108 = vmul.f32 %v107, %v35
    %v109 = vmul.f32 %v107, %v36
    %v110 = vadd.f32 %v104, %v108
    %v111 = vadd.f32 %v105, %v109
    %s112 = sld [smem:[#allocation2 + $0x8]]
    %v113 = vstv %s112
    %v114 = vmul.f32 %v113, %v74
    %v115 = vmul.f32 %v113, %v75
    %v116 = vadd.f32 %v110, %v114
    %v117 = vadd.f32 %v111, %v115
    %vm118 = vcmp.lt.s32.totalorder %v38, 16
    %vm119 = vcmp.lt.s32.totalorder %v39, 16
    %120 = vrot.lane.b32.xlu0 %v90, 16
    %v121 = vpop.permute.xlu0 %120
    %122 = vrot.lane.b32.xlu0 %v91, 16
    %v123 = vpop.permute.xlu0 %122
    %v124 = vsel %vm118, %v121, %v123
    %v125 = vsel %vm118, %v123, %v121
    %v126 = vsel %vm118, 0.0, %v125
    %v127 = vsel %vm119, 0.0, %v124
    %vm128 = vcmp.ge.s32.totalorder %v38, 240
    %vm129 = vcmp.ge.s32.totalorder %v39, 240
    %130 = vrot.lane.b32.xlu0 %v116, 112
    %v131 = vpop.permute.xlu0 %130
    %132 = vrot.lane.b32.xlu0 %v117, 112
    %v133 = vpop.permute.xlu0 %132
    %vm134 = vcmp.lt.s32.totalorder %v38, 112
    %v135 = vsel %vm134, %v131, %v133
    %v136 = vsel %vm134, %v133, %v131
    %v137 = vsel %vm128, 0.0, %v135
    %v138 = vsel %vm129, 0.0, %v136
    %v139 = vadd.f32 %v100, %v126
    %v140 = vadd.f32 %v101, %v127
    %v141 = vadd.f32 %v139, %v137
    %v142 = vadd.f32 %v140, %v138
    %v143 = vxor.u32 %v141, 2147483648
    %v144 = vxor.u32 %v142, 2147483648
    %v145 = vmul.f32 %v143, 1.442695
    %v146 = vpow.pop %v145
    %v147 = vmul.f32 %v144, 1.442695
    %v148 = vpow.pop %v147
    %v149 = vadd.f32 %v146, 1.0
    %v150 = vadd.f32 %v148, 1.0
    %v151 = vrcp.pop %v149
    %v152 = vmul.f32 1.0, %v151
    %v153 = vrcp.pop %v150
    %v154 = vmul.f32 1.0, %v153
    %v155 = vmul.f32 %v152, %v35
    %v156 = vmul.f32 %v154, %v36
    %157 = vst [vmem:[#allocation7] sm:$0xff] %v155
    %158 = vst [vmem:[#allocation7 + $0x8] sm:$0xff] %v156
    // Predicated region
    $region18: #{tpu_custom_call.1} parent=1 // pred_check
      _
    $region19: #{tpu_custom_call.1} parent=1 // pred_check_branch
      %160 = sbr.rel (0) target = $region21
    $region20: #{tpu_custom_call.1} parent=1 // pred_region
      %s162 = ssub.s32 256, 256
      %163 = vsyncadd [#allocation4], %s162
      %s165 = sshll.u32 [#allocation7], 4
      %s166 = int_to_ptr.vmem [resolvable:$true] %s165
      %168 = dma.vmem_to_hbm [thread:$0]  %s166, 256, %s2, [#allocation4]
    $region21: #{tpu_custom_call.1} parent=1 // pred_fallthru
      _
    // Predicated region
    $region22: #{tpu_custom_call.1} parent=1 // pred_check
      _
    $region23: #{tpu_custom_call.1} parent=1 // pred_check_branch
      %170 = sbr.rel (0) target = $region25
    $region24: #{tpu_custom_call.1} parent=1 // pred_region
      %171 = dma.done [#allocation4], 256
    $region25: #{tpu_custom_call.1} parent=1 // pred_fallthru
      _
    %172 = vsyncpa [#allocation3], 1
    %173 = vsyncpa [#allocation4], 1
    %174 = vsyncpa [#allocation5], 1

</llo_original>
